<compile_context>
chip_gen: v7x
topology: tpu7x:2x2x1
jax: 0.10.0
libtpu: 0.0.40
codegen_flags: <defaults>
</compile_context>

<pallas_src>
import jax
import jax.numpy as jnp
from jax.experimental import pallas as pl
from jax.experimental.pallas import tpu as pltpu

LANE = 128
SUBLANE = 8


def _round_up(n, m):
    return ((n + m - 1) // m) * m


def _pad2(a, rows, cols):
    r, c = a.shape
    return jnp.zeros((rows, cols), a.dtype).at[:r, :c].set(a)


# ----------------------------------------------------------------------------
# Pallas kernel: one batch tile of the full VAE forward. All matmuls hit the
# MXU with 128-wide (padded) N dims; ReLU/exp hit the VPU/EUP in f32.
# ----------------------------------------------------------------------------
def _vae_kernel(x_ref, noise_ref,
                w1_ref, b1_ref, w2_ref, b2_ref,
                w3m_ref, b3m_ref, w3v_ref, b3v_ref,
                w4_ref, b4_ref, w5_ref, b5_ref, w6_ref, b6_ref,
                mean_ref, logvar_ref, latent_ref, xhat_ref):
    cdt = w1_ref.dtype  # matmul input dtype (f32, or bf16 when use_bf16=True)

    def dense(a, w_ref, b_ref):
        # f32 accumulation regardless of input dtype; bias add in f32.
        return jnp.dot(a.astype(cdt), w_ref[...],
                       preferred_element_type=jnp.float32) + b_ref[...]

    x = x_ref[...]

    # ---- encoder: Linear(D,128) -> ReLU -> Linear(128,64p) -> ReLU
    h = jnp.maximum(dense(x, w1_ref, b1_ref), 0.0)
    h = jnp.maximum(dense(h, w2_ref, b2_ref), 0.0)

    # ---- final encoder layer split into mean / logvar heads (lane-aligned,
    #      no in-kernel slice at a non-128 boundary)
    mean = dense(h, w3m_ref, b3m_ref)
    logvar = dense(h, w3v_ref, b3v_ref)

    # ---- reparameterization: latent = mean + exp(logvar / 2) * noise
    # (deterministic=True realized by passing zero noise from the wrapper;
    #  padded lanes stay exactly 0 because logvar/mean/noise padding is 0)
    latent = mean + jnp.exp(logvar * 0.5) * noise_ref[...]

    # ---- decoder: Linear(Lp,64p) -> ReLU -> Linear(64p,128) -> ReLU
    #               -> Linear(128, Dp)
    d = jnp.maximum(dense(latent, w4_ref, b4_ref), 0.0)
    d = jnp.maximum(dense(d, w5_ref, b5_ref), 0.0)
    xhat = dense(d, w6_ref, b6_ref)

    mean_ref[...] = mean.astype(mean_ref.dtype)
    logvar_ref[...] = logvar.astype(logvar_ref.dtype)
    latent_ref[...] = latent.astype(latent_ref.dtype)
    xhat_ref[...] = xhat.astype(xhat_ref.dtype)


# ----------------------------------------------------------------------------
# Parameter preparation: split w3 into mean/logvar heads and zero-pad every
# feature dim up to a multiple of 128 lanes. Padding is mathematically inert:
# padded activation lanes are exactly 0 through the whole network.
# ----------------------------------------------------------------------------
def prepare_padded_params(params, input_dim, latent_dim, *, use_bf16=False):
    Dp = _round_up(input_dim, LANE)
    Lp = _round_up(latent_dim, LANE)
    H2p = _round_up(64, LANE)  # 128
    wdt = jnp.bfloat16 if use_bf16 else jnp.float32

    w3, b3 = params["w3"], params["b3"]
    w3m, w3v = w3[:, :latent_dim], w3[:, latent_dim:]
    b3m, b3v = b3[:, :latent_dim], b3[:, latent_dim:]

    return {
        "w1": _pad2(params["w1"], Dp, 128).astype(wdt),
        "b1": _pad2(params["b1"], 1, 128).astype(jnp.float32),
        "w2": _pad2(params["w2"], 128, H2p).astype(wdt),
        "b2": _pad2(params["b2"], 1, H2p).astype(jnp.float32),
        "w3m": _pad2(w3m, H2p, Lp).astype(wdt),
        "b3m": _pad2(b3m, 1, Lp).astype(jnp.float32),
        "w3v": _pad2(w3v, H2p, Lp).astype(wdt),
        "b3v": _pad2(b3v, 1, Lp).astype(jnp.float32),
        "w4": _pad2(params["w4"], Lp, H2p).astype(wdt),
        "b4": _pad2(params["b4"], 1, H2p).astype(jnp.float32),
        "w5": _pad2(params["w5"], H2p, 128).astype(wdt),
        "b5": _pad2(params["b5"], 1, 128).astype(jnp.float32),
        "w6": _pad2(params["w6"], 128, Dp).astype(wdt),
        "b6": _pad2(params["b6"], 1, Dp).astype(jnp.float32),
    }


# ----------------------------------------------------------------------------
# Wrapper
# ----------------------------------------------------------------------------
def vae_forward(x, noise, params, *, latent_dim, block_batch=None,
                use_bf16=False):
    """Runs the fused, batch-tiled VAE forward Pallas kernel.

    Args:
      x:      [B, input_dim] float32
      noise:  [B, latent_dim] float32 (pass zeros for deterministic=True)
      params: dict of weights (W: [in, out]) and biases (b: [1, out])
    Returns:
      (mean, logvar, latent, xhat) with original (unpadded) shapes.
    """
    B, input_dim = x.shape
    assert noise.shape == (B, latent_dim)

    Dp = _round_up(input_dim, LANE)
    Lp = _round_up(latent_dim, LANE)

    # Batch tile: large tiles amortize per-grid-step overhead; small batches
    # just round up to the sublane granule. (On v5e with 128 MiB VMEM a larger
    # block_batch, e.g. 1024, can be passed explicitly.)
    if block_batch is None:
        block_batch = 256 if B >= 256 else _round_up(max(B, SUBLANE), SUBLANE)
    TB = block_batch
    Bp = _round_up(B, TB)
    num_tiles = Bp // TB

    # Pad activations (zero rows/lanes are sliced off at the end).
    xp = jnp.zeros((Bp, Dp), jnp.float32).at[:B, :input_dim].set(
        x.astype(jnp.float32))
    noisep = jnp.zeros((Bp, Lp), jnp.float32).at[:B, :latent_dim].set(
        noise.astype(jnp.float32))

    pp = prepare_padded_params(params, input_dim, latent_dim,
                               use_bf16=use_bf16)
    weight_order = ["w1", "b1", "w2", "b2", "w3m", "b3m", "w3v", "b3v",
                    "w4", "b4", "w5", "b5", "w6", "b6"]
    weights = [pp[k] for k in weight_order]

    def batch_spec(feat):
        # batch-tiled, lane-dense (feat is a multiple of 128)
        return pl.BlockSpec((TB, feat), lambda i: (i, 0))

    def resident_spec(arr):
        # full array resident in VMEM across all grid iterations
        return pl.BlockSpec(arr.shape, lambda i: (0, 0))

    in_specs = [batch_spec(Dp), batch_spec(Lp)] + \
               [resident_spec(w) for w in weights]
    out_specs = (batch_spec(Lp), batch_spec(Lp), batch_spec(Lp),
                 batch_spec(Dp))
    out_shape = (
        jax.ShapeDtypeStruct((Bp, Lp), jnp.float32),   # mean   (padded)
        jax.ShapeDtypeStruct((Bp, Lp), jnp.float32),   # logvar (padded)
        jax.ShapeDtypeStruct((Bp, Lp), jnp.float32),   # latent (padded)
        jax.ShapeDtypeStruct((Bp, Dp), jnp.float32),   # xhat   (padded)
    )

    mean_p, logvar_p, latent_p, xhat_p = pl.pallas_call(
        _vae_kernel,
        grid=(num_tiles,),
        in_specs=in_specs,
        out_specs=out_specs,
        out_shape=out_shape,
        compiler_params=pltpu.CompilerParams(
            dimension_semantics=("parallel",),      # shards across TCs on v7x
            vmem_limit_bytes=32 * 1024 * 1024,
        ),
    )(xp, noisep, *weights)

    mean = mean_p[:B, :latent_dim]
    logvar = logvar_p[:B, :latent_dim]
    latent = latent_p[:B, :latent_dim]
    xhat = xhat_p[:B, :input_dim]
    return mean, logvar, latent, xhat


# ----------------------------------------------------------------------------
# Deterministic parameter init (mirrors nn.Linear shapes; kaiming-uniform-ish)
# ----------------------------------------------------------------------------
def init_params(key, input_dim, latent_dim):
    dims = [
        (input_dim, 128),        # encoder l1
        (128, 64),               # encoder l2
        (64, latent_dim * 2),    # encoder l3
        (latent_dim, 64),        # decoder l1
        (64, 128),               # decoder l2
        (128, input_dim),        # decoder l3
    ]
    params = {}
    for i, (fan_in, fan_out) in enumerate(dims, start=1):
        key, kw, kb = jax.random.split(key, 3)
        bound = 1.0 / jnp.sqrt(jnp.float32(fan_in))
        # stored as [in, out] (transposed vs torch's [out, in])
        params[f"w{i}"] = jax.random.uniform(
            kw, (fan_in, fan_out), jnp.float32, -bound, bound)
        params[f"b{i}"] = jax.random.uniform(
            kb, (1, fan_out), jnp.float32, -bound, bound)
    # self.sigma = nn.Parameter(torch.ones(input_dim) * 0.1)
    # TODO(synk): `sigma` is defined in __init__ but never used in forward();
    # kept here only for parameter parity.
    params["sigma"] = jnp.full((input_dim,), 0.1, dtype=jnp.float32)
    return params


# ----------------------------------------------------------------------------
# Pure-JAX reference for a sanity check
# ----------------------------------------------------------------------------
def vae_reference(x, noise, params, *, latent_dim):
    h = jnp.maximum(x @ params["w1"] + params["b1"], 0.0)
    h = jnp.maximum(h @ params["w2"] + params["b2"], 0.0)
    h = h @ params["w3"] + params["b3"]
    mean, logvar = h[:, :latent_dim], h[:, latent_dim:]
    latent = mean + jnp.exp(logvar * 0.5) * noise
    d = jnp.maximum(latent @ params["w4"] + params["b4"], 0.0)
    d = jnp.maximum(d @ params["w5"] + params["b5"], 0.0)
    xhat = d @ params["w6"] + params["b6"]
    return mean, logvar, latent, xhat


if __name__ == "__main__":
    # Small config consistent with the module: flat vector inputs.
    config = {"input_dim": 32, "latent_dim": 8}
    batch = 8

    key = jax.random.PRNGKey(0)
    key, kx, kn = jax.random.split(key, 3)

    params = init_params(key, config["input_dim"], config["latent_dim"])
    x = jax.random.normal(kx, (batch, config["input_dim"]), jnp.float32)
    # noise analogous to torch.randn(B, latent_dim); deterministic=False path.
    noise = jax.random.normal(kn, (batch, config["latent_dim"]), jnp.float32)

    mean, logvar, latent, xhat = jax.block_until_ready(
        vae_forward(x, noise, params, latent_dim=config["latent_dim"]))

    # correctness check against pure-JAX reference
    ref = vae_reference(x, noise, params, latent_dim=config["latent_dim"])
    for got, want in zip((mean, logvar, latent, xhat), ref):
        assert got.shape == want.shape
        assert jnp.max(jnp.abs(got - want)) < 1e-4

    # deterministic=True path: zero noise -> latent == mean
    mean_d, _, latent_d, _ = jax.block_until_ready(
        vae_forward(x, jnp.zeros_like(noise), params,
                    latent_dim=config["latent_dim"]))
    assert jnp.max(jnp.abs(latent_d - mean_d)) < 1e-6

    print("KERNEL_OK")
</pallas_src>

<mosaic_0001>
module attributes {stable_mosaic.version = 11 : i64} {
  func.func @_vae_kernel(%arg0: i32, %arg1: memref<8x128xf32, #tpu.memory_space<vmem>>, %arg2: memref<8x128xf32, #tpu.memory_space<vmem>>, %arg3: memref<128x128xf32, #tpu.memory_space<vmem>>, %arg4: memref<1x128xf32, #tpu.memory_space<vmem>>, %arg5: memref<128x128xf32, #tpu.memory_space<vmem>>, %arg6: memref<1x128xf32, #tpu.memory_space<vmem>>, %arg7: memref<128x128xf32, #tpu.memory_space<vmem>>, %arg8: memref<1x128xf32, #tpu.memory_space<vmem>>, %arg9: memref<128x128xf32, #tpu.memory_space<vmem>>, %arg10: memref<1x128xf32, #tpu.memory_space<vmem>>, %arg11: memref<128x128xf32, #tpu.memory_space<vmem>>, %arg12: memref<1x128xf32, #tpu.memory_space<vmem>>, %arg13: memref<128x128xf32, #tpu.memory_space<vmem>>, %arg14: memref<1x128xf32, #tpu.memory_space<vmem>>, %arg15: memref<128x128xf32, #tpu.memory_space<vmem>>, %arg16: memref<1x128xf32, #tpu.memory_space<vmem>>, %arg17: memref<8x128xf32, #tpu.memory_space<vmem>>, %arg18: memref<8x128xf32, #tpu.memory_space<vmem>>, %arg19: memref<8x128xf32, #tpu.memory_space<vmem>>, %arg20: memref<8x128xf32, #tpu.memory_space<vmem>>) attributes {dimension_semantics = [#tpu.dimension_semantics<parallel>], iteration_bounds = array<i64: 1>, scalar_prefetch = 0 : i64, scratch_operands = 0 : i64, tpu.core_type = #tpu.core_type<tc>, window_params = [{transform_indices = @transform_0, window_bounds = array<i64: 8, 128>}, {transform_indices = @transform_1, window_bounds = array<i64: 8, 128>}, {pipeline_mode = #tpu.pipeline_mode<synchronous>, transform_indices = @transform_2, window_bounds = array<i64: 128, 128>}, {pipeline_mode = #tpu.pipeline_mode<synchronous>, transform_indices = @transform_3, window_bounds = array<i64: 1, 128>}, {pipeline_mode = #tpu.pipeline_mode<synchronous>, transform_indices = @transform_4, window_bounds = array<i64: 128, 128>}, {pipeline_mode = #tpu.pipeline_mode<synchronous>, transform_indices = @transform_5, window_bounds = array<i64: 1, 128>}, {pipeline_mode = #tpu.pipeline_mode<synchronous>, transform_indices = @transform_6, window_bounds = array<i64: 128, 128>}, {pipeline_mode = #tpu.pipeline_mode<synchronous>, transform_indices = @transform_7, window_bounds = array<i64: 1, 128>}, {pipeline_mode = #tpu.pipeline_mode<synchronous>, transform_indices = @transform_8, window_bounds = array<i64: 128, 128>}, {pipeline_mode = #tpu.pipeline_mode<synchronous>, transform_indices = @transform_9, window_bounds = array<i64: 1, 128>}, {pipeline_mode = #tpu.pipeline_mode<synchronous>, transform_indices = @transform_10, window_bounds = array<i64: 128, 128>}, {pipeline_mode = #tpu.pipeline_mode<synchronous>, transform_indices = @transform_11, window_bounds = array<i64: 1, 128>}, {pipeline_mode = #tpu.pipeline_mode<synchronous>, transform_indices = @transform_12, window_bounds = array<i64: 128, 128>}, {pipeline_mode = #tpu.pipeline_mode<synchronous>, transform_indices = @transform_13, window_bounds = array<i64: 1, 128>}, {pipeline_mode = #tpu.pipeline_mode<synchronous>, transform_indices = @transform_14, window_bounds = array<i64: 128, 128>}, {pipeline_mode = #tpu.pipeline_mode<synchronous>, transform_indices = @transform_15, window_bounds = array<i64: 1, 128>}, {transform_indices = @transform_16, window_bounds = array<i64: 8, 128>}, {transform_indices = @transform_17, window_bounds = array<i64: 8, 128>}, {transform_indices = @transform_18, window_bounds = array<i64: 8, 128>}, {transform_indices = @transform_19, window_bounds = array<i64: 8, 128>}]} {
    %c0 = arith.constant 0 : index
    %c0_0 = arith.constant 0 : index
    %0 = vector.load %arg1[%c0, %c0_0] : memref<8x128xf32, #tpu.memory_space<vmem>>, vector<8x128xf32>
    %c0_1 = arith.constant 0 : index
    %c0_2 = arith.constant 0 : index
    %1 = vector.load %arg3[%c0_1, %c0_2] : memref<128x128xf32, #tpu.memory_space<vmem>>, vector<128x128xf32>
    %cst = arith.constant dense<0.000000e+00> : vector<8x128xf32>
    %2 = tpu.matmul %0, %1, %cst {dimension_numbers = #tpu.dot_dimension_numbers<[1], [0], [0], [1], [0, 0, 1, 1], [], []>} : vector<8x128xf32>, vector<128x128xf32>, vector<8x128xf32> -> vector<8x128xf32>
    %c0_3 = arith.constant 0 : index
    %c0_4 = arith.constant 0 : index
    %3 = vector.load %arg4[%c0_3, %c0_4] : memref<1x128xf32, #tpu.memory_space<vmem>>, vector<1x128xf32>
    %4 = vector.broadcast %3 : vector<1x128xf32> to vector<8x128xf32>
    %5 = arith.addf %2, %4 : vector<8x128xf32>
    %cst_5 = arith.constant 0.000000e+00 : f32
    %6 = vector.broadcast %cst_5 : f32 to vector<8x128xf32>
    %7 = arith.maximumf %5, %6 : vector<8x128xf32>
    %c0_6 = arith.constant 0 : index
    %c0_7 = arith.constant 0 : index
    %8 = vector.load %arg5[%c0_6, %c0_7] : memref<128x128xf32, #tpu.memory_space<vmem>>, vector<128x128xf32>
    %cst_8 = arith.constant dense<0.000000e+00> : vector<8x128xf32>
    %9 = tpu.matmul %7, %8, %cst_8 {dimension_numbers = #tpu.dot_dimension_numbers<[1], [0], [0], [1], [0, 0, 1, 1], [], []>} : vector<8x128xf32>, vector<128x128xf32>, vector<8x128xf32> -> vector<8x128xf32>
    %c0_9 = arith.constant 0 : index
    %c0_10 = arith.constant 0 : index
    %10 = vector.load %arg6[%c0_9, %c0_10] : memref<1x128xf32, #tpu.memory_space<vmem>>, vector<1x128xf32>
    %11 = vector.broadcast %10 : vector<1x128xf32> to vector<8x128xf32>
    %12 = arith.addf %9, %11 : vector<8x128xf32>
    %cst_11 = arith.constant 0.000000e+00 : f32
    %13 = vector.broadcast %cst_11 : f32 to vector<8x128xf32>
    %14 = arith.maximumf %12, %13 : vector<8x128xf32>
    %c0_12 = arith.constant 0 : index
    %c0_13 = arith.constant 0 : index
    %15 = vector.load %arg7[%c0_12, %c0_13] : memref<128x128xf32, #tpu.memory_space<vmem>>, vector<128x128xf32>
    %cst_14 = arith.constant dense<0.000000e+00> : vector<8x128xf32>
    %16 = tpu.matmul %14, %15, %cst_14 {dimension_numbers = #tpu.dot_dimension_numbers<[1], [0], [0], [1], [0, 0, 1, 1], [], []>} : vector<8x128xf32>, vector<128x128xf32>, vector<8x128xf32> -> vector<8x128xf32>
    %c0_15 = arith.constant 0 : index
    %c0_16 = arith.constant 0 : index
    %17 = vector.load %arg8[%c0_15, %c0_16] : memref<1x128xf32, #tpu.memory_space<vmem>>, vector<1x128xf32>
    %18 = vector.broadcast %17 : vector<1x128xf32> to vector<8x128xf32>
    %19 = arith.addf %16, %18 : vector<8x128xf32>
    %c0_17 = arith.constant 0 : index
    %c0_18 = arith.constant 0 : index
    %20 = vector.load %arg9[%c0_17, %c0_18] : memref<128x128xf32, #tpu.memory_space<vmem>>, vector<128x128xf32>
    %cst_19 = arith.constant dense<0.000000e+00> : vector<8x128xf32>
    %21 = tpu.matmul %14, %20, %cst_19 {dimension_numbers = #tpu.dot_dimension_numbers<[1], [0], [0], [1], [0, 0, 1, 1], [], []>} : vector<8x128xf32>, vector<128x128xf32>, vector<8x128xf32> -> vector<8x128xf32>
    %c0_20 = arith.constant 0 : index
    %c0_21 = arith.constant 0 : index
    %22 = vector.load %arg10[%c0_20, %c0_21] : memref<1x128xf32, #tpu.memory_space<vmem>>, vector<1x128xf32>
    %23 = vector.broadcast %22 : vector<1x128xf32> to vector<8x128xf32>
    %24 = arith.addf %21, %23 : vector<8x128xf32>
    %cst_22 = arith.constant 5.000000e-01 : f32
    %25 = vector.broadcast %cst_22 : f32 to vector<8x128xf32>
    %26 = arith.mulf %24, %25 : vector<8x128xf32>
    %27 = math.exp %26 : vector<8x128xf32>
    %c0_23 = arith.constant 0 : index
    %c0_24 = arith.constant 0 : index
    %28 = vector.load %arg2[%c0_23, %c0_24] : memref<8x128xf32, #tpu.memory_space<vmem>>, vector<8x128xf32>
    %29 = arith.mulf %27, %28 : vector<8x128xf32>
    %30 = arith.addf %19, %29 : vector<8x128xf32>
    %c0_25 = arith.constant 0 : index
    %c0_26 = arith.constant 0 : index
    %31 = vector.load %arg11[%c0_25, %c0_26] : memref<128x128xf32, #tpu.memory_space<vmem>>, vector<128x128xf32>
    %cst_27 = arith.constant dense<0.000000e+00> : vector<8x128xf32>
    %32 = tpu.matmul %30, %31, %cst_27 {dimension_numbers = #tpu.dot_dimension_numbers<[1], [0], [0], [1], [0, 0, 1, 1], [], []>} : vector<8x128xf32>, vector<128x128xf32>, vector<8x128xf32> -> vector<8x128xf32>
    %c0_28 = arith.constant 0 : index
    %c0_29 = arith.constant 0 : index
    %33 = vector.load %arg12[%c0_28, %c0_29] : memref<1x128xf32, #tpu.memory_space<vmem>>, vector<1x128xf32>
    %34 = vector.broadcast %33 : vector<1x128xf32> to vector<8x128xf32>
    %35 = arith.addf %32, %34 : vector<8x128xf32>
    %cst_30 = arith.constant 0.000000e+00 : f32
    %36 = vector.broadcast %cst_30 : f32 to vector<8x128xf32>
    %37 = arith.maximumf %35, %36 : vector<8x128xf32>
    %c0_31 = arith.constant 0 : index
    %c0_32 = arith.constant 0 : index
    %38 = vector.load %arg13[%c0_31, %c0_32] : memref<128x128xf32, #tpu.memory_space<vmem>>, vector<128x128xf32>
    %cst_33 = arith.constant dense<0.000000e+00> : vector<8x128xf32>
    %39 = tpu.matmul %37, %38, %cst_33 {dimension_numbers = #tpu.dot_dimension_numbers<[1], [0], [0], [1], [0, 0, 1, 1], [], []>} : vector<8x128xf32>, vector<128x128xf32>, vector<8x128xf32> -> vector<8x128xf32>
    %c0_34 = arith.constant 0 : index
    %c0_35 = arith.constant 0 : index
    %40 = vector.load %arg14[%c0_34, %c0_35] : memref<1x128xf32, #tpu.memory_space<vmem>>, vector<1x128xf32>
    %41 = vector.broadcast %40 : vector<1x128xf32> to vector<8x128xf32>
    %42 = arith.addf %39, %41 : vector<8x128xf32>
    %cst_36 = arith.constant 0.000000e+00 : f32
    %43 = vector.broadcast %cst_36 : f32 to vector<8x128xf32>
    %44 = arith.maximumf %42, %43 : vector<8x128xf32>
    %c0_37 = arith.constant 0 : index
    %c0_38 = arith.constant 0 : index
    %45 = vector.load %arg15[%c0_37, %c0_38] : memref<128x128xf32, #tpu.memory_space<vmem>>, vector<128x128xf32>
    %cst_39 = arith.constant dense<0.000000e+00> : vector<8x128xf32>
    %46 = tpu.matmul %44, %45, %cst_39 {dimension_numbers = #tpu.dot_dimension_numbers<[1], [0], [0], [1], [0, 0, 1, 1], [], []>} : vector<8x128xf32>, vector<128x128xf32>, vector<8x128xf32> -> vector<8x128xf32>
    %c0_40 = arith.constant 0 : index
    %c0_41 = arith.constant 0 : index
    %47 = vector.load %arg16[%c0_40, %c0_41] : memref<1x128xf32, #tpu.memory_space<vmem>>, vector<1x128xf32>
    %48 = vector.broadcast %47 : vector<1x128xf32> to vector<8x128xf32>
    %49 = arith.addf %46, %48 : vector<8x128xf32>
    %c0_42 = arith.constant 0 : index
    %c0_43 = arith.constant 0 : index
    %50 = vector.load %arg17[%c0_42, %c0_43] : memref<8x128xf32, #tpu.memory_space<vmem>>, vector<8x128xf32>
    tpu.vector_store %arg17[%c0_42, %c0_43], %19 {strides = array<i32>} : memref<8x128xf32, #tpu.memory_space<vmem>>, vector<8x128xf32>,
    %c0_44 = arith.constant 0 : index
    %c0_45 = arith.constant 0 : index
    %51 = vector.load %arg18[%c0_44, %c0_45] : memref<8x128xf32, #tpu.memory_space<vmem>>, vector<8x128xf32>
    tpu.vector_store %arg18[%c0_44, %c0_45], %24 {strides = array<i32>} : memref<8x128xf32, #tpu.memory_space<vmem>>, vector<8x128xf32>,
    %c0_46 = arith.constant 0 : index
    %c0_47 = arith.constant 0 : index
    %52 = vector.load %arg19[%c0_46, %c0_47] : memref<8x128xf32, #tpu.memory_space<vmem>>, vector<8x128xf32>
    tpu.vector_store %arg19[%c0_46, %c0_47], %30 {strides = array<i32>} : memref<8x128xf32, #tpu.memory_space<vmem>>, vector<8x128xf32>,
    %c0_48 = arith.constant 0 : index
    %c0_49 = arith.constant 0 : index
    %53 = vector.load %arg20[%c0_48, %c0_49] : memref<8x128xf32, #tpu.memory_space<vmem>>, vector<8x128xf32>
    tpu.vector_store %arg20[%c0_48, %c0_49], %49 {strides = array<i32>} : memref<8x128xf32, #tpu.memory_space<vmem>>, vector<8x128xf32>,
    return
  }
  func.func @transform_0(%arg0: i32) -> (i32, i32) {
    %c0_i32 = arith.constant 0 : i32
    %c0_i32_0 = arith.constant 0 : i32
    return %arg0, %c0_i32 : i32, i32
  }
  func.func @transform_1(%arg0: i32) -> (i32, i32) {
    %c0_i32 = arith.constant 0 : i32
    %c0_i32_0 = arith.constant 0 : i32
    return %arg0, %c0_i32 : i32, i32
  }
  func.func @transform_2(%arg0: i32) -> (i32, i32) {
    %c0_i32 = arith.constant 0 : i32
    %c0_i32_0 = arith.constant 0 : i32
    %c0_i32_1 = arith.constant 0 : i32
    return %c0_i32, %c0_i32_0 : i32, i32
  }
  func.func @transform_3(%arg0: i32) -> (i32, i32) {
    %c0_i32 = arith.constant 0 : i32
    %c0_i32_0 = arith.constant 0 : i32
    %c0_i32_1 = arith.constant 0 : i32
    return %c0_i32, %c0_i32_0 : i32, i32
  }
  func.func @transform_4(%arg0: i32) -> (i32, i32) {
    %c0_i32 = arith.constant 0 : i32
    %c0_i32_0 = arith.constant 0 : i32
    %c0_i32_1 = arith.constant 0 : i32
    return %c0_i32, %c0_i32_0 : i32, i32
  }
  func.func @transform_5(%arg0: i32) -> (i32, i32) {
    %c0_i32 = arith.constant 0 : i32
    %c0_i32_0 = arith.constant 0 : i32
    %c0_i32_1 = arith.constant 0 : i32
    return %c0_i32, %c0_i32_0 : i32, i32
  }
  func.func @transform_6(%arg0: i32) -> (i32, i32) {
    %c0_i32 = arith.constant 0 : i32
    %c0_i32_0 = arith.constant 0 : i32
    %c0_i32_1 = arith.constant 0 : i32
    return %c0_i32, %c0_i32_0 : i32, i32
  }
  func.func @transform_7(%arg0: i32) -> (i32, i32) {
    %c0_i32 = arith.constant 0 : i32
    %c0_i32_0 = arith.constant 0 : i32
    %c0_i32_1 = arith.constant 0 : i32
    return %c0_i32, %c0_i32_0 : i32, i32
  }
  func.func @transform_8(%arg0: i32) -> (i32, i32) {
    %c0_i32 = arith.constant 0 : i32
    %c0_i32_0 = arith.constant 0 : i32
    %c0_i32_1 = arith.constant 0 : i32
    return %c0_i32, %c0_i32_0 : i32, i32
  }
  func.func @transform_9(%arg0: i32) -> (i32, i32) {
    %c0_i32 = arith.constant 0 : i32
    %c0_i32_0 = arith.constant 0 : i32
    %c0_i32_1 = arith.constant 0 : i32
    return %c0_i32, %c0_i32_0 : i32, i32
  }
  func.func @transform_10(%arg0: i32) -> (i32, i32) {
    %c0_i32 = arith.constant 0 : i32
    %c0_i32_0 = arith.constant 0 : i32
    %c0_i32_1 = arith.constant 0 : i32
    return %c0_i32, %c0_i32_0 : i32, i32
  }
  func.func @transform_11(%arg0: i32) -> (i32, i32) {
    %c0_i32 = arith.constant 0 : i32
    %c0_i32_0 = arith.constant 0 : i32
    %c0_i32_1 = arith.constant 0 : i32
    return %c0_i32, %c0_i32_0 : i32, i32
  }
  func.func @transform_12(%arg0: i32) -> (i32, i32) {
    %c0_i32 = arith.constant 0 : i32
    %c0_i32_0 = arith.constant 0 : i32
    %c0_i32_1 = arith.constant 0 : i32
    return %c0_i32, %c0_i32_0 : i32, i32
  }
  func.func @transform_13(%arg0: i32) -> (i32, i32) {
    %c0_i32 = arith.constant 0 : i32
    %c0_i32_0 = arith.constant 0 : i32
    %c0_i32_1 = arith.constant 0 : i32
    return %c0_i32, %c0_i32_0 : i32, i32
  }
  func.func @transform_14(%arg0: i32) -> (i32, i32) {
    %c0_i32 = arith.constant 0 : i32
    %c0_i32_0 = arith.constant 0 : i32
    %c0_i32_1 = arith.constant 0 : i32
    return %c0_i32, %c0_i32_0 : i32, i32
  }
  func.func @transform_15(%arg0: i32) -> (i32, i32) {
    %c0_i32 = arith.constant 0 : i32
    %c0_i32_0 = arith.constant 0 : i32
    %c0_i32_1 = arith.constant 0 : i32
    return %c0_i32, %c0_i32_0 : i32, i32
  }
  func.func @transform_16(%arg0: i32) -> (i32, i32) {
    %c0_i32 = arith.constant 0 : i32
    %c0_i32_0 = arith.constant 0 : i32
    return %arg0, %c0_i32 : i32, i32
  }
  func.func @transform_17(%arg0: i32) -> (i32, i32) {
    %c0_i32 = arith.constant 0 : i32
    %c0_i32_0 = arith.constant 0 : i32
    return %arg0, %c0_i32 : i32, i32
  }
  func.func @transform_18(%arg0: i32) -> (i32, i32) {
    %c0_i32 = arith.constant 0 : i32
    %c0_i32_0 = arith.constant 0 : i32
    return %arg0, %c0_i32 : i32, i32
  }
  func.func @transform_19(%arg0: i32) -> (i32, i32) {
    %c0_i32 = arith.constant 0 : i32
    %c0_i32_0 = arith.constant 0 : i32
    return %arg0, %c0_i32 : i32, i32
  }
}

</mosaic_0001>

<llo_original>
// kernel: tpu_custom_call.1
$region0: #{tpu_custom_call.1}
  #allocation0 [shape = 'u32[]', space=smem, size = 0x4, offset = 0x4, fixed_abs, tag = 'smem constant byte address 0x4 - core index']
  #allocation1 [shape = 'u32[144,128]{1,0:T(1,128)}', space=vmem, size = 0x12000, scoped, tag = 'internal scratch']
  %s0 = inlined_call_operand.hbm [shape: f32[8,128], index: 0, kind: input, shape index: {}]
  %s1 = inlined_call_operand.hbm [shape: f32[8,128], index: 1, kind: input, shape index: {}]
  %s2 = inlined_call_operand.hbm [shape: f32[128,128], index: 2, kind: input, shape index: {}]
  %s3 = inlined_call_operand.vmem [shape: f32[1,128], index: 3, kind: input, shape index: {}]
  %s4 = inlined_call_operand.hbm [shape: f32[128,128], index: 4, kind: input, shape index: {}]
  %s5 = inlined_call_operand.vmem [shape: f32[1,128], index: 5, kind: input, shape index: {}]
  %s6 = inlined_call_operand.hbm [shape: f32[128,128], index: 6, kind: input, shape index: {}]
  %s7 = inlined_call_operand.vmem [shape: f32[1,128], index: 7, kind: input, shape index: {}]
  %s8 = inlined_call_operand.hbm [shape: f32[128,128], index: 8, kind: input, shape index: {}]
  %s9 = inlined_call_operand.vmem [shape: f32[1,128], index: 9, kind: input, shape index: {}]
  %s10 = inlined_call_operand.hbm [shape: f32[128,128], index: 10, kind: input, shape index: {}]
  %s11 = inlined_call_operand.vmem [shape: f32[1,128], index: 11, kind: input, shape index: {}]
  %s12 = inlined_call_operand.hbm [shape: f32[128,128], index: 12, kind: input, shape index: {}]
  %s13 = inlined_call_operand.vmem [shape: f32[1,128], index: 13, kind: input, shape index: {}]
  %s14 = inlined_call_operand.hbm [shape: f32[128,128], index: 14, kind: input, shape index: {}]
  %s15 = inlined_call_operand.vmem [shape: f32[1,128], index: 15, kind: input, shape index: {}]
  %s16 = inlined_call_operand.hbm [shape: f32[8,128], index: 16, kind: output, shape index: {0}]
  %s17 = inlined_call_operand.hbm [shape: f32[8,128], index: 17, kind: output, shape index: {1}]
  %s18 = inlined_call_operand.hbm [shape: f32[8,128], index: 18, kind: output, shape index: {2}]
  %s19 = inlined_call_operand.hbm [shape: f32[8,128], index: 19, kind: output, shape index: {3}]
  %20 = xla_tuple %s16, %s17, %s18, %s19
  %s21 = sld [smem:[#allocation0]]
  $region134: #{tpu_custom_call.1} parent=0
    _
  %s23 = ssub.s32 1, %s21
  %s24 = scalar_select 0, %s23, %s21
  $region1: #{tpu_custom_call.1} parent=0
    #allocation2 [shape = 'u8[4096]{0}', space=vmem, size = 0x1000, scoped, tag = 'input window, operand 0, single buffered']
    #allocation3 [shape = 's32[1]{0}', space=sflag, size = 0x4, scoped, tag = 'scoped memory for tpu_custom_call.1']
    #allocation4 [shape = 's32[1]{0}', space=sflag, size = 0x4, scoped, tag = 'scoped memory for tpu_custom_call.1']
    #allocation5 [shape = 'u8[4096]{0}', space=vmem, size = 0x1000, scoped, tag = 'input window, operand 1, single buffered']
    #allocation6 [shape = 's32[1]{0}', space=sflag, size = 0x4, scoped, tag = 'scoped memory for tpu_custom_call.1']
    #allocation7 [shape = 'u8[65536]{0}', space=vmem, size = 0x10000, scoped, tag = 'input window, operand 2, single buffered']
    #allocation8 [shape = 'u8[65536]{0}', space=vmem, size = 0x10000, scoped, tag = 'input window, operand 4, single buffered']
    #allocation9 [shape = 's32[1]{0}', space=sflag, size = 0x4, scoped, tag = 'scoped memory for tpu_custom_call.1']
    #allocation10 [shape = 'u8[65536]{0}', space=vmem, size = 0x10000, scoped, tag = 'input window, operand 6, single buffered']
    #allocation11 [shape = 'u8[65536]{0}', space=vmem, size = 0x10000, scoped, tag = 'input window, operand 8, single buffered']
    #allocation12 [shape = 's32[1]{0}', space=sflag, size = 0x4, scoped, tag = 'scoped memory for tpu_custom_call.1']
    #allocation13 [shape = 'u8[65536]{0}', space=vmem, size = 0x10000, scoped, tag = 'input window, operand 10, single buffered']
    #allocation14 [shape = 'u8[65536]{0}', space=vmem, size = 0x10000, scoped, tag = 'input window, operand 12, single buffered']
    #allocation15 [shape = 's32[1]{0}', space=sflag, size = 0x4, scoped, tag = 'scoped memory for tpu_custom_call.1']
    #allocation16 [shape = 'u8[65536]{0}', space=vmem, size = 0x10000, scoped, tag = 'input window, operand 14, single buffered']
    #allocation17 [shape = 'u8[4096]{0}', space=vmem, size = 0x1000, scoped, tag = 'output window, operand 0, single buffered']
    #allocation18 [shape = 'u8[4096]{0}', space=vmem, size = 0x1000, scoped, tag = 'output window, operand 1, single buffered']
    #allocation19 [shape = 's32[1]{0}', space=sflag, size = 0x4, scoped, tag = 'scoped memory for tpu_custom_call.1']
    #allocation20 [shape = 'u8[4096]{0}', space=vmem, size = 0x1000, scoped, tag = 'output window, operand 2, single buffered']
    #allocation21 [shape = 'u8[4096]{0}', space=vmem, size = 0x1000, scoped, tag = 'output window, operand 3, single buffered']
    #allocation22 [shape = 's32[1]{0}', space=sflag, size = 0x4, scoped, tag = 'scoped memory for tpu_custom_call.1']
    %25 = vsyncpa [#allocation3], 0
    %26 = vsyncpa [#allocation6], 0
    %27 = vsyncpa [#allocation9], 0
    %28 = vsyncpa [#allocation12], 0
    %29 = vsyncpa [#allocation15], 0
    %30 = vsyncpa [#allocation4], 0
    %31 = vsyncpa [#allocation19], 0
    %32 = vsyncpa [#allocation22], 0
    // Predicated region
    $region2: #{tpu_custom_call.1} parent=1 // pred_check
      _
    $region3: #{tpu_custom_call.1} parent=1 // pred_check_branch
      %34 = sbr.rel (0) target = $region5
    $region4: #{tpu_custom_call.1} parent=1 // pred_region
      %s36 = ssub.s32 128, 128
      %37 = vsyncadd [#allocation3], %s36
      %s39 = sshll.u32 [#allocation2], 4
      %s40 = int_to_ptr.vmem [resolvable:$true] %s39
      %42 = dma.hbm_to_vmem [thread:$0]  %s0, 128, %s40, [#allocation3]
    $region5: #{tpu_custom_call.1} parent=1 // pred_fallthru
      _
    // Predicated region
    $region6: #{tpu_custom_call.1} parent=1 // pred_check
      _
    $region7: #{tpu_custom_call.1} parent=1 // pred_check_branch
      %44 = sbr.rel (0) target = $region9
    $region8: #{tpu_custom_call.1} parent=1 // pred_region
      %s46 = ssub.s32 128, 128
      %47 = vsyncadd [#allocation6], %s46
      %s49 = sshll.u32 [#allocation5], 4
      %s50 = int_to_ptr.vmem [resolvable:$true] %s49
      %52 = dma.hbm_to_vmem [thread:$0]  %s1, 128, %s50, [#allocation6]
    $region9: #{tpu_custom_call.1} parent=1 // pred_fallthru
      _
    // Predicated region
    $region10: #{tpu_custom_call.1} parent=1 // pred_check
      _
    $region11: #{tpu_custom_call.1} parent=1 // pred_check_branch
      %54 = sbr.rel (0) target = $region13
    $region12: #{tpu_custom_call.1} parent=1 // pred_region
      %s56 = ssub.s32 2048, 2048
      %57 = vsyncadd [#allocation6], %s56
      %s58 = sshll.u32 [#allocation7], 4
      %s59 = int_to_ptr.vmem [resolvable:$true] %s58
      %64 = dma.hbm_to_vmem [thread:$0]  %s2, 2048, %s59, [#allocation6], 128, 128, 8
    $region13: #{tpu_custom_call.1} parent=1 // pred_fallthru
      _
    // Predicated region
    $region14: #{tpu_custom_call.1} parent=1 // pred_check
      _
    $region15: #{tpu_custom_call.1} parent=1 // pred_check_branch
      %66 = sbr.rel (0) target = $region17
    $region16: #{tpu_custom_call.1} parent=1 // pred_region
      _
    $region17: #{tpu_custom_call.1} parent=1 // pred_fallthru
      _
    // Predicated region
    $region18: #{tpu_custom_call.1} parent=1 // pred_check
      _
    $region19: #{tpu_custom_call.1} parent=1 // pred_check_branch
      %68 = sbr.rel (0) target = $region21
    $region20: #{tpu_custom_call.1} parent=1 // pred_region
      %s70 = ssub.s32 2048, 2048
      %71 = vsyncadd [#allocation9], %s70
      %s72 = sshll.u32 [#allocation8], 4
      %s73 = int_to_ptr.vmem [resolvable:$true] %s72
      %78 = dma.hbm_to_vmem [thread:$0]  %s4, 2048, %s73, [#allocation9], 128, 128, 8
    $region21: #{tpu_custom_call.1} parent=1 // pred_fallthru
      _
    // Predicated region
    $region22: #{tpu_custom_call.1} parent=1 // pred_check
      _
    $region23: #{tpu_custom_call.1} parent=1 // pred_check_branch
      %80 = sbr.rel (0) target = $region25
    $region24: #{tpu_custom_call.1} parent=1 // pred_region
      _
    $region25: #{tpu_custom_call.1} parent=1 // pred_fallthru
      _
    // Predicated region
    $region26: #{tpu_custom_call.1} parent=1 // pred_check
      _
    $region27: #{tpu_custom_call.1} parent=1 // pred_check_branch
      %82 = sbr.rel (0) target = $region29
    $region28: #{tpu_custom_call.1} parent=1 // pred_region
      %s84 = ssub.s32 2048, 2048
      %85 = vsyncadd [#allocation9], %s84
      %s86 = sshll.u32 [#allocation10], 4
      %s87 = int_to_ptr.vmem [resolvable:$true] %s86
      %92 = dma.hbm_to_vmem [thread:$0]  %s6, 2048, %s87, [#allocation9], 128, 128, 8
    $region29: #{tpu_custom_call.1} parent=1 // pred_fallthru
      _
    // Predicated region
    $region30: #{tpu_custom_call.1} parent=1 // pred_check
      _
    $region31: #{tpu_custom_call.1} parent=1 // pred_check_branch
      %94 = sbr.rel (0) target = $region33
    $region32: #{tpu_custom_call.1} parent=1 // pred_region
      _
    $region33: #{tpu_custom_call.1} parent=1 // pred_fallthru
      _
    // Predicated region
    $region34: #{tpu_custom_call.1} parent=1 // pred_check
      _
    $region35: #{tpu_custom_call.1} parent=1 // pred_check_branch
      %96 = sbr.rel (0) target = $region37
    $region36: #{tpu_custom_call.1} parent=1 // pred_region
      %s98 = ssub.s32 2048, 2048
      %99 = vsyncadd [#allocation12], %s98
      %s100 = sshll.u32 [#allocation11], 4
      %s101 = int_to_ptr.vmem [resolvable:$true] %s100
      %106 = dma.hbm_to_vmem [thread:$0]  %s8, 2048, %s101, [#allocation12], 128, 128, 8
    $region37: #{tpu_custom_call.1} parent=1 // pred_fallthru
      _
    // Predicated region
    $region38: #{tpu_custom_call.1} parent=1 // pred_check
      _
    $region39: #{tpu_custom_call.1} parent=1 // pred_check_branch
      %108 = sbr.rel (0) target = $region41
    $region40: #{tpu_custom_call.1} parent=1 // pred_region
      _
    $region41: #{tpu_custom_call.1} parent=1 // pred_fallthru
      _
    // Predicated region
    $region42: #{tpu_custom_call.1} parent=1 // pred_check
      _
    $region43: #{tpu_custom_call.1} parent=1 // pred_check_branch
      %110 = sbr.rel (0) target = $region45
    $region44: #{tpu_custom_call.1} parent=1 // pred_region
      %s112 = ssub.s32 2048, 2048
      %113 = vsyncadd [#allocation12], %s112
      %s114 = sshll.u32 [#allocation13], 4
      %s115 = int_to_ptr.vmem [resolvable:$true] %s114
      %120 = dma.hbm_to_vmem [thread:$0]  %s10, 2048, %s115, [#allocation12], 128, 128, 8
    $region45: #{tpu_custom_call.1} parent=1 // pred_fallthru
      _
    // Predicated region
    $region46: #{tpu_custom_call.1} parent=1 // pred_check
      _
    $region47: #{tpu_custom_call.1} parent=1 // pred_check_branch
      %122 = sbr.rel (0) target = $region49
    $region48: #{tpu_custom_call.1} parent=1 // pred_region
      _
    $region49: #{tpu_custom_call.1} parent=1 // pred_fallthru
      _
    // Predicated region
    $region50: #{tpu_custom_call.1} parent=1 // pred_check
      _
    $region51: #{tpu_custom_call.1} parent=1 // pred_check_branch
      %124 = sbr.rel (0) target = $region53
    $region52: #{tpu_custom_call.1} parent=1 // pred_region
      %s126 = ssub.s32 2048, 2048
      %127 = vsyncadd [#allocation15], %s126
      %s128 = sshll.u32 [#allocation14], 4
      %s129 = int_to_ptr.vmem [resolvable:$true] %s128
      %134 = dma.hbm_to_vmem [thread:$0]  %s12, 2048, %s129, [#allocation15], 128, 128, 8
    $region53: #{tpu_custom_call.1} parent=1 // pred_fallthru
      _
    // Predicated region
    $region54: #{tpu_custom_call.1} parent=1 // pred_check
      _
    $region55: #{tpu_custom_call.1} parent=1 // pred_check_branch
      %136 = sbr.rel (0) target = $region57
    $region56: #{tpu_custom_call.1} parent=1 // pred_region
      _
    $region57: #{tpu_custom_call.1} parent=1 // pred_fallthru
      _
    // Predicated region
    $region58: #{tpu_custom_call.1} parent=1 // pred_check
      _
    $region59: #{tpu_custom_call.1} parent=1 // pred_check_branch
      %138 = sbr.rel (0) target = $region61
    $region60: #{tpu_custom_call.1} parent=1 // pred_region
      %s140 = ssub.s32 2048, 2048
      %141 = vsyncadd [#allocation15], %s140
      %s142 = sshll.u32 [#allocation16], 4
      %s143 = int_to_ptr.vmem [resolvable:$true] %s142
      %148 = dma.hbm_to_vmem [thread:$0]  %s14, 2048, %s143, [#allocation15], 128, 128, 8
    $region61: #{tpu_custom_call.1} parent=1 // pred_fallthru
      _
    // Predicated region
    $region62: #{tpu_custom_call.1} parent=1 // pred_check
      _
    $region63: #{tpu_custom_call.1} parent=1 // pred_check_branch
      %150 = sbr.rel (0) target = $region65
    $region64: #{tpu_custom_call.1} parent=1 // pred_region
      _
    $region65: #{tpu_custom_call.1} parent=1 // pred_fallthru
      _
    // Predicated region
    $region66: #{tpu_custom_call.1} parent=1 // pred_check
      _
    $region67: #{tpu_custom_call.1} parent=1 // pred_check_branch
      %152 = sbr.rel (0) target = $region69
    $region68: #{tpu_custom_call.1} parent=1 // pred_region
      %153 = dma.done [#allocation3], 128
    $region69: #{tpu_custom_call.1} parent=1 // pred_fallthru
      _
    // Predicated region
    $region70: #{tpu_custom_call.1} parent=1 // pred_check
      _
    $region71: #{tpu_custom_call.1} parent=1 // pred_check_branch
      %155 = sbr.rel (0) target = $region73
    $region72: #{tpu_custom_call.1} parent=1 // pred_region
      %156 = dma.done [#allocation6], 128
    $region73: #{tpu_custom_call.1} parent=1 // pred_fallthru
      _
    // Predicated region
    $region74: #{tpu_custom_call.1} parent=1 // pred_check
      _
    $region75: #{tpu_custom_call.1} parent=1 // pred_check_branch
      %158 = sbr.rel (0) target = $region77
    $region76: #{tpu_custom_call.1} parent=1 // pred_region
      %159 = dma.done [#allocation6], 2048
    $region77: #{tpu_custom_call.1} parent=1 // pred_fallthru
      _
    // Predicated region
    $region78: #{tpu_custom_call.1} parent=1 // pred_check
      _
    $region79: #{tpu_custom_call.1} parent=1 // pred_check_branch
      %161 = sbr.rel (0) target = $region81
    $region80: #{tpu_custom_call.1} parent=1 // pred_region
      %162 = dma.done [#allocation9], 2048
    $region81: #{tpu_custom_call.1} parent=1 // pred_fallthru
      _
    // Predicated region
    $region82: #{tpu_custom_call.1} parent=1 // pred_check
      _
    $region83: #{tpu_custom_call.1} parent=1 // pred_check_branch
      %164 = sbr.rel (0) target = $region85
    $region84: #{tpu_custom_call.1} parent=1 // pred_region
      %165 = dma.done [#allocation9], 2048
    $region85: #{tpu_custom_call.1} parent=1 // pred_fallthru
      _
    // Predicated region
    $region86: #{tpu_custom_call.1} parent=1 // pred_check
      _
    $region87: #{tpu_custom_call.1} parent=1 // pred_check_branch
      %167 = sbr.rel (0) target = $region89
    $region88: #{tpu_custom_call.1} parent=1 // pred_region
      %168 = dma.done [#allocation12], 2048
    $region89: #{tpu_custom_call.1} parent=1 // pred_fallthru
      _
    // Predicated region
    $region90: #{tpu_custom_call.1} parent=1 // pred_check
      _
    $region91: #{tpu_custom_call.1} parent=1 // pred_check_branch
      %170 = sbr.rel (0) target = $region93
    $region92: #{tpu_custom_call.1} parent=1 // pred_region
      %171 = dma.done [#allocation12], 2048
    $region93: #{tpu_custom_call.1} parent=1 // pred_fallthru
      _
    // Predicated region
    $region94: #{tpu_custom_call.1} parent=1 // pred_check
      _
    $region95: #{tpu_custom_call.1} parent=1 // pred_check_branch
      %173 = sbr.rel (0) target = $region97
    $region96: #{tpu_custom_call.1} parent=1 // pred_region
      %174 = dma.done [#allocation15], 2048
    $region97: #{tpu_custom_call.1} parent=1 // pred_fallthru
      _
    // Predicated region
    $region98: #{tpu_custom_call.1} parent=1 // pred_check
      _
    $region99: #{tpu_custom_call.1} parent=1 // pred_check_branch
      %176 = sbr.rel (0) target = $region101
    $region100: #{tpu_custom_call.1} parent=1 // pred_region
      %177 = dma.done [#allocation15], 2048
    $region101: #{tpu_custom_call.1} parent=1 // pred_fallthru
      _
    %v178 = vld [vmem:[#allocation2] sm:$0xff]
    %v179 = vld [vmem:[#allocation7] sm:$0xff]
    %v180 = vld [vmem:[#allocation7 + $0x8] sm:$0xff]
    %v181 = vld [vmem:[#allocation7 + $0x10] sm:$0xff]
    %v182 = vld [vmem:[#allocation7 + $0x18] sm:$0xff]
    %v183 = vld [vmem:[#allocation7 + $0x20] sm:$0xff]
    %v184 = vld [vmem:[#allocation7 + $0x28] sm:$0xff]
    %v185 = vld [vmem:[#allocation7 + $0x30] sm:$0xff]
    %v186 = vld [vmem:[#allocation7 + $0x38] sm:$0xff]
    %v187 = vld [vmem:[#allocation7 + $0x40] sm:$0xff]
    %v188 = vld [vmem:[#allocation7 + $0x48] sm:$0xff]
    %v189 = vld [vmem:[#allocation7 + $0x50] sm:$0xff]
    %v190 = vld [vmem:[#allocation7 + $0x58] sm:$0xff]
    %v191 = vld [vmem:[#allocation7 + $0x60] sm:$0xff]
    %v192 = vld [vmem:[#allocation7 + $0x68] sm:$0xff]
    %v193 = vld [vmem:[#allocation7 + $0x70] sm:$0xff]
    %v194 = vld [vmem:[#allocation7 + $0x78] sm:$0xff]
    %v195 = vld [vmem:[%s3] sm:$0x1]
    %v197 = vlaneseq
    %v198 = vshrl.u32 %v197, 7
    %v199 = vsub.s32 0, %v198
    %v200 = vrot.slane %v195, %v199
    %202 = vmatprep.subr.mxu0 0.0
    %203 = vmatpush1.msra.mxu0 %v179
    %204 = vmatprep.subr.mxu0 0.0
    %205 = vmatpush1.msra.mxu0 %v180
    %206 = vmatprep.subr.mxu0 0.0
    %207 = vmatpush1.msra.mxu0 %v181
    %208 = vmatprep.subr.mxu0 0.0
    %209 = vmatpush1.msra.mxu0 %v182
    %210 = vmatprep.subr.mxu0 0.0
    %211 = vmatpush1.msra.mxu0 %v183
    %212 = vmatprep.subr.mxu0 0.0
    %213 = vmatpush1.msra.mxu0 %v184
    %214 = vmatprep.subr.mxu0 0.0
    %215 = vmatpush1.msra.mxu0 %v185
    %216 = vmatprep.subr.mxu0 0.0
    %217 = vmatpush1.msra.mxu0 %v186
    %218 = vmatprep.subr.mxu0 0.0
    %219 = vmatpush1.msra.mxu0 %v187
    %220 = vmatprep.subr.mxu0 0.0
    %221 = vmatpush1.msra.mxu0 %v188
    %222 = vmatprep.subr.mxu0 0.0
    %223 = vmatpush1.msra.mxu0 %v189
    %224 = vmatprep.subr.mxu0 0.0
    %225 = vmatpush1.msra.mxu0 %v190
    %226 = vmatprep.subr.mxu0 0.0
    %227 = vmatpush1.msra.mxu0 %v191
    %228 = vmatprep.subr.mxu0 0.0
    %229 = vmatpush1.msra.mxu0 %v192
    %230 = vmatprep.subr.mxu0 0.0
    %231 = vmatpush1.msra.mxu0 %v193
    %232 = vmatprep.subr.mxu0 0.0
    %233 = vmatpush1.msra.mxu0 %v194
    %234 = vmatprep.subr.mxu0 0.0
    %235 = vmatpush1.msra.mxu0 0.0
    %236 = vmatprep.subr.mxu0 0.0
    %237 = vmatpush1.msra.mxu0 0.0
    %238 = vmatprep.subr.mxu0 0.0
    %239 = vmatpush1.msra.mxu0 0.0
    %240 = vmatprep.subr.mxu0 0.0
    %241 = vmatpush1.msra.mxu0 0.0
    %242 = vmatprep.subr.mxu0 0.0
    %243 = vmatpush1.msra.mxu0 0.0
    %244 = vmatprep.subr.mxu0 0.0
    %245 = vmatpush1.msra.mxu0 0.0
    %246 = vmatprep.subr.mxu0 0.0
    %247 = vmatpush1.msra.mxu0 0.0
    %248 = vmatprep.subr.mxu0 0.0
    %249 = vmatpush1.msra.mxu0 0.0
    %250 = vmatprep.subr.mxu0 0.0
    %251 = vmatpush1.msra.mxu0 0.0
    %252 = vmatprep.subr.mxu0 0.0
    %253 = vmatpush1.msra.mxu0 0.0
    %254 = vmatprep.subr.mxu0 0.0
    %255 = vmatpush1.msra.mxu0 0.0
    %256 = vmatprep.subr.mxu0 0.0
    %257 = vmatpush1.msra.mxu0 0.0
    %258 = vmatprep.subr.mxu0 0.0
    %259 = vmatpush1.msra.mxu0 0.0
    %260 = vmatprep.subr.mxu0 0.0
    %261 = vmatpush1.msra.mxu0 0.0
    %262 = vmatprep.subr.mxu0 0.0
    %263 = vmatpush1.msra.mxu0 0.0
    %264 = vmatprep.subr.mxu0 0.0
    %265 = vmatpush1.msra.mxu0 0.0
    %266 = vmatprep.mubr.f32.mxu0 0.0
    %267 = vmatmul.mubr.f32.gmra.mrb[0].mxu0 %v178
    %v268 = vpop.f32.mrb[0].mxu0
    %v269 = vadd.f32 %v200, %v268
    %v270 = vpop.f32.mrb[0].mxu0
    %271 = vdwg.mxu0
    %v272 = vmax.f32 %v269, 0.0
    %v273 = vld [vmem:[#allocation8] sm:$0xff]
    %v274 = vld [vmem:[#allocation8 + $0x8] sm:$0xff]
    %v275 = vld [vmem:[#allocation8 + $0x10] sm:$0xff]
    %v276 = vld [vmem:[#allocation8 + $0x18] sm:$0xff]
    %v277 = vld [vmem:[#allocation8 + $0x20] sm:$0xff]
    %v278 = vld [vmem:[#allocation8 + $0x28] sm:$0xff]
    %v279 = vld [vmem:[#allocation8 + $0x30] sm:$0xff]
    %v280 = vld [vmem:[#allocation8 + $0x38] sm:$0xff]
    %v281 = vld [vmem:[#allocation8 + $0x40] sm:$0xff]
    %v282 = vld [vmem:[#allocation8 + $0x48] sm:$0xff]
    %v283 = vld [vmem:[#allocation8 + $0x50] sm:$0xff]
    %v284 = vld [vmem:[#allocation8 + $0x58] sm:$0xff]
    %v285 = vld [vmem:[#allocation8 + $0x60] sm:$0xff]
    %v286 = vld [vmem:[#allocation8 + $0x68] sm:$0xff]
    %v287 = vld [vmem:[#allocation8 + $0x70] sm:$0xff]
    %v288 = vld [vmem:[#allocation8 + $0x78] sm:$0xff]
    %v289 = vld [vmem:[%s5] sm:$0x1]
    %v291 = vlaneseq
    %v292 = vshrl.u32 %v291, 7
    %v293 = vsub.s32 0, %v292
    %v294 = vrot.slane %v289, %v293
    %296 = vmatprep.subr.mxu0 0.0
    %297 = vmatpush1.msra.mxu0 %v273
    %298 = vmatprep.subr.mxu0 0.0
    %299 = vmatpush1.msra.mxu0 %v274
    %300 = vmatprep.subr.mxu0 0.0
    %301 = vmatpush1.msra.mxu0 %v275
    %302 = vmatprep.subr.mxu0 0.0
    %303 = vmatpush1.msra.mxu0 %v276
    %304 = vmatprep.subr.mxu0 0.0
    %305 = vmatpush1.msra.mxu0 %v277
    %306 = vmatprep.subr.mxu0 0.0
    %307 = vmatpush1.msra.mxu0 %v278
    %308 = vmatprep.subr.mxu0 0.0
    %309 = vmatpush1.msra.mxu0 %v279
    %310 = vmatprep.subr.mxu0 0.0
    %311 = vmatpush1.msra.mxu0 %v280
    %312 = vmatprep.subr.mxu0 0.0
    %313 = vmatpush1.msra.mxu0 %v281
    %314 = vmatprep.subr.mxu0 0.0
    %315 = vmatpush1.msra.mxu0 %v282
    %316 = vmatprep.subr.mxu0 0.0
    %317 = vmatpush1.msra.mxu0 %v283
    %318 = vmatprep.subr.mxu0 0.0
    %319 = vmatpush1.msra.mxu0 %v284
    %320 = vmatprep.subr.mxu0 0.0
    %321 = vmatpush1.msra.mxu0 %v285
    %322 = vmatprep.subr.mxu0 0.0
    %323 = vmatpush1.msra.mxu0 %v286
    %324 = vmatprep.subr.mxu0 0.0
    %325 = vmatpush1.msra.mxu0 %v287
    %326 = vmatprep.subr.mxu0 0.0
    %327 = vmatpush1.msra.mxu0 %v288
    %328 = vmatprep.subr.mxu0 0.0
    %329 = vmatpush1.msra.mxu0 0.0
    %330 = vmatprep.subr.mxu0 0.0
    %331 = vmatpush1.msra.mxu0 0.0
    %332 = vmatprep.subr.mxu0 0.0
    %333 = vmatpush1.msra.mxu0 0.0
    %334 = vmatprep.subr.mxu0 0.0
    %335 = vmatpush1.msra.mxu0 0.0
    %336 = vmatprep.subr.mxu0 0.0
    %337 = vmatpush1.msra.mxu0 0.0
    %338 = vmatprep.subr.mxu0 0.0
    %339 = vmatpush1.msra.mxu0 0.0
    %340 = vmatprep.subr.mxu0 0.0
    %341 = vmatpush1.msra.mxu0 0.0
    %342 = vmatprep.subr.mxu0 0.0
    %343 = vmatpush1.msra.mxu0 0.0
    %344 = vmatprep.subr.mxu0 0.0
    %345 = vmatpush1.msra.mxu0 0.0
    %346 = vmatprep.subr.mxu0 0.0
    %347 = vmatpush1.msra.mxu0 0.0
    %348 = vmatprep.subr.mxu0 0.0
    %349 = vmatpush1.msra.mxu0 0.0
    %350 = vmatprep.subr.mxu0 0.0
    %351 = vmatpush1.msra.mxu0 0.0
    %352 = vmatprep.subr.mxu0 0.0
    %353 = vmatpush1.msra.mxu0 0.0
    %354 = vmatprep.subr.mxu0 0.0
    %355 = vmatpush1.msra.mxu0 0.0
    %356 = vmatprep.subr.mxu0 0.0
    %357 = vmatpush1.msra.mxu0 0.0
    %358 = vmatprep.subr.mxu0 0.0
    %359 = vmatpush1.msra.mxu0 0.0
    %360 = vmatprep.mubr.f32.mxu0 0.0
    %361 = vmatmul.mubr.f32.gmra.mrb[0].mxu0 %v272
    %v362 = vpop.f32.mrb[0].mxu0
    %v363 = vadd.f32 %v294, %v362
    %v364 = vpop.f32.mrb[0].mxu0
    %365 = vdwg.mxu0
    %v366 = vmax.f32 %v363, 0.0
    %v367 = vld [vmem:[#allocation10] sm:$0xff]
    %v368 = vld [vmem:[#allocation10 + $0x8] sm:$0xff]
    %v369 = vld [vmem:[#allocation10 + $0x10] sm:$0xff]
    %v370 = vld [vmem:[#allocation10 + $0x18] sm:$0xff]
    %v371 = vld [vmem:[#allocation10 + $0x20] sm:$0xff]
    %v372 = vld [vmem:[#allocation10 + $0x28] sm:$0xff]
    %v373 = vld [vmem:[#allocation10 + $0x30] sm:$0xff]
    %v374 = vld [vmem:[#allocation10 + $0x38] sm:$0xff]
    %v375 = vld [vmem:[#allocation10 + $0x40] sm:$0xff]
    %v376 = vld [vmem:[#allocation10 + $0x48] sm:$0xff]
    %v377 = vld [vmem:[#allocation10 + $0x50] sm:$0xff]
    %v378 = vld [vmem:[#allocation10 + $0x58] sm:$0xff]
    %v379 = vld [vmem:[#allocation10 + $0x60] sm:$0xff]
    %v380 = vld [vmem:[#allocation10 + $0x68] sm:$0xff]
    %v381 = vld [vmem:[#allocation10 + $0x70] sm:$0xff]
    %v382 = vld [vmem:[#allocation10 + $0x78] sm:$0xff]
    %v383 = vld [vmem:[%s7] sm:$0x1]
    %v385 = vlaneseq
    %v386 = vshrl.u32 %v385, 7
    %v387 = vsub.s32 0, %v386
    %v388 = vrot.slane %v383, %v387
    %390 = vmatprep.subr.mxu0 0.0
    %391 = vmatpush1.msra.mxu0 %v367
    %392 = vmatprep.subr.mxu0 0.0
    %393 = vmatpush1.msra.mxu0 %v368
    %394 = vmatprep.subr.mxu0 0.0
    %395 = vmatpush1.msra.mxu0 %v369
    %396 = vmatprep.subr.mxu0 0.0
    %397 = vmatpush1.msra.mxu0 %v370
    %398 = vmatprep.subr.mxu0 0.0
    %399 = vmatpush1.msra.mxu0 %v371
    %400 = vmatprep.subr.mxu0 0.0
    %401 = vmatpush1.msra.mxu0 %v372
    %402 = vmatprep.subr.mxu0 0.0
    %403 = vmatpush1.msra.mxu0 %v373
    %404 = vmatprep.subr.mxu0 0.0
    %405 = vmatpush1.msra.mxu0 %v374
    %406 = vmatprep.subr.mxu0 0.0
    %407 = vmatpush1.msra.mxu0 %v375
    %408 = vmatprep.subr.mxu0 0.0
    %409 = vmatpush1.msra.mxu0 %v376
    %410 = vmatprep.subr.mxu0 0.0
    %411 = vmatpush1.msra.mxu0 %v377
    %412 = vmatprep.subr.mxu0 0.0
    %413 = vmatpush1.msra.mxu0 %v378
    %414 = vmatprep.subr.mxu0 0.0
    %415 = vmatpush1.msra.mxu0 %v379
    %416 = vmatprep.subr.mxu0 0.0
    %417 = vmatpush1.msra.mxu0 %v380
    %418 = vmatprep.subr.mxu0 0.0
    %419 = vmatpush1.msra.mxu0 %v381
    %420 = vmatprep.subr.mxu0 0.0
    %421 = vmatpush1.msra.mxu0 %v382
    %422 = vmatprep.subr.mxu0 0.0
    %423 = vmatpush1.msra.mxu0 0.0
    %424 = vmatprep.subr.mxu0 0.0
    %425 = vmatpush1.msra.mxu0 0.0
    %426 = vmatprep.subr.mxu0 0.0
    %427 = vmatpush1.msra.mxu0 0.0
    %428 = vmatprep.subr.mxu0 0.0
    %429 = vmatpush1.msra.mxu0 0.0
    %430 = vmatprep.subr.mxu0 0.0
    %431 = vmatpush1.msra.mxu0 0.0
    %432 = vmatprep.subr.mxu0 0.0
    %433 = vmatpush1.msra.mxu0 0.0
    %434 = vmatprep.subr.mxu0 0.0
    %435 = vmatpush1.msra.mxu0 0.0
    %436 = vmatprep.subr.mxu0 0.0
    %437 = vmatpush1.msra.mxu0 0.0
    %438 = vmatprep.subr.mxu0 0.0
    %439 = vmatpush1.msra.mxu0 0.0
    %440 = vmatprep.subr.mxu0 0.0
    %441 = vmatpush1.msra.mxu0 0.0
    %442 = vmatprep.subr.mxu0 0.0
    %443 = vmatpush1.msra.mxu0 0.0
    %444 = vmatprep.subr.mxu0 0.0
    %445 = vmatpush1.msra.mxu0 0.0
    %446 = vmatprep.subr.mxu0 0.0
    %447 = vmatpush1.msra.mxu0 0.0
    %448 = vmatprep.subr.mxu0 0.0
    %449 = vmatpush1.msra.mxu0 0.0
    %450 = vmatprep.subr.mxu0 0.0
    %451 = vmatpush1.msra.mxu0 0.0
    %452 = vmatprep.subr.mxu0 0.0
    %453 = vmatpush1.msra.mxu0 0.0
    %454 = vmatprep.mubr.f32.mxu0 0.0
    %455 = vmatmul.mubr.f32.gmra.mrb[0].mxu0 %v366
    %v456 = vpop.f32.mrb[0].mxu0
    %v457 = vadd.f32 %v388, %v456
    %v458 = vpop.f32.mrb[0].mxu0
    %459 = vdwg.mxu0
    %v460 = vld [vmem:[#allocation11] sm:$0xff]
    %v461 = vld [vmem:[#allocation11 + $0x8] sm:$0xff]
    %v462 = vld [vmem:[#allocation11 + $0x10] sm:$0xff]
    %v463 = vld [vmem:[#allocation11 + $0x18] sm:$0xff]
    %v464 = vld [vmem:[#allocation11 + $0x20] sm:$0xff]
    %v465 = vld [vmem:[#allocation11 + $0x28] sm:$0xff]
    %v466 = vld [vmem:[#allocation11 + $0x30] sm:$0xff]
    %v467 = vld [vmem:[#allocation11 + $0x38] sm:$0xff]
    %v468 = vld [vmem:[#allocation11 + $0x40] sm:$0xff]
    %v469 = vld [vmem:[#allocation11 + $0x48] sm:$0xff]
    %v470 = vld [vmem:[#allocation11 + $0x50] sm:$0xff]
    %v471 = vld [vmem:[#allocation11 + $0x58] sm:$0xff]
    %v472 = vld [vmem:[#allocation11 + $0x60] sm:$0xff]
    %v473 = vld [vmem:[#allocation11 + $0x68] sm:$0xff]
    %v474 = vld [vmem:[#allocation11 + $0x70] sm:$0xff]
    %v475 = vld [vmem:[#allocation11 + $0x78] sm:$0xff]
    %v476 = vld [vmem:[%s9] sm:$0x1]
    %v478 = vlaneseq
    %v479 = vshrl.u32 %v478, 7
    %v480 = vsub.s32 0, %v479
    %v481 = vrot.slane %v476, %v480
    %483 = vmatprep.subr.mxu0 0.0
    %484 = vmatpush1.msra.mxu0 %v460
    %485 = vmatprep.subr.mxu0 0.0
    %486 = vmatpush1.msra.mxu0 %v461
    %487 = vmatprep.subr.mxu0 0.0
    %488 = vmatpush1.msra.mxu0 %v462
    %489 = vmatprep.subr.mxu0 0.0
    %490 = vmatpush1.msra.mxu0 %v463
    %491 = vmatprep.subr.mxu0 0.0
    %492 = vmatpush1.msra.mxu0 %v464
    %493 = vmatprep.subr.mxu0 0.0
    %494 = vmatpush1.msra.mxu0 %v465
    %495 = vmatprep.subr.mxu0 0.0
    %496 = vmatpush1.msra.mxu0 %v466
    %497 = vmatprep.subr.mxu0 0.0
    %498 = vmatpush1.msra.mxu0 %v467
    %499 = vmatprep.subr.mxu0 0.0
    %500 = vmatpush1.msra.mxu0 %v468
    %501 = vmatprep.subr.mxu0 0.0
    %502 = vmatpush1.msra.mxu0 %v469
    %503 = vmatprep.subr.mxu0 0.0
    %504 = vmatpush1.msra.mxu0 %v470
    %505 = vmatprep.subr.mxu0 0.0
    %506 = vmatpush1.msra.mxu0 %v471
    %507 = vmatprep.subr.mxu0 0.0
    %508 = vmatpush1.msra.mxu0 %v472
    %509 = vmatprep.subr.mxu0 0.0
    %510 = vmatpush1.msra.mxu0 %v473
    %511 = vmatprep.subr.mxu0 0.0
    %512 = vmatpush1.msra.mxu0 %v474
    %513 = vmatprep.subr.mxu0 0.0
    %514 = vmatpush1.msra.mxu0 %v475
    %515 = vmatprep.subr.mxu0 0.0
    %516 = vmatpush1.msra.mxu0 0.0
    %517 = vmatprep.subr.mxu0 0.0
    %518 = vmatpush1.msra.mxu0 0.0
    %519 = vmatprep.subr.mxu0 0.0
    %520 = vmatpush1.msra.mxu0 0.0
    %521 = vmatprep.subr.mxu0 0.0
    %522 = vmatpush1.msra.mxu0 0.0
    %523 = vmatprep.subr.mxu0 0.0
    %524 = vmatpush1.msra.mxu0 0.0
    %525 = vmatprep.subr.mxu0 0.0
    %526 = vmatpush1.msra.mxu0 0.0
    %527 = vmatprep.subr.mxu0 0.0
    %528 = vmatpush1.msra.mxu0 0.0
    %529 = vmatprep.subr.mxu0 0.0
    %530 = vmatpush1.msra.mxu0 0.0
    %531 = vmatprep.subr.mxu0 0.0
    %532 = vmatpush1.msra.mxu0 0.0
    %533 = vmatprep.subr.mxu0 0.0
    %534 = vmatpush1.msra.mxu0 0.0
    %535 = vmatprep.subr.mxu0 0.0
    %536 = vmatpush1.msra.mxu0 0.0
    %537 = vmatprep.subr.mxu0 0.0
    %538 = vmatpush1.msra.mxu0 0.0
    %539 = vmatprep.subr.mxu0 0.0
    %540 = vmatpush1.msra.mxu0 0.0
    %541 = vmatprep.subr.mxu0 0.0
    %542 = vmatpush1.msra.mxu0 0.0
    %543 = vmatprep.subr.mxu0 0.0
    %544 = vmatpush1.msra.mxu0 0.0
    %545 = vmatprep.subr.mxu0 0.0
    %546 = vmatpush1.msra.mxu0 0.0
    %547 = vmatprep.mubr.f32.mxu0 0.0
    %548 = vmatmul.mubr.f32.gmra.mrb[0].mxu0 %v366
    %v549 = vpop.f32.mrb[0].mxu0
    %v550 = vadd.f32 %v481, %v549
    %v551 = vpop.f32.mrb[0].mxu0
    %552 = vdwg.mxu0
    %v553 = vmul.f32 %v550, 0.5
    %v554 = vmul.f32 %v553, 1.442695
    %v555 = vpow.pop %v554
    %v556 = vld [vmem:[#allocation5] sm:$0xff]
    %v557 = vmul.f32 %v555, %v556
    %v558 = vadd.f32 %v457, %v557
    %v559 = vld [vmem:[#allocation13] sm:$0xff]
    %v560 = vld [vmem:[#allocation13 + $0x8] sm:$0xff]
    %v561 = vld [vmem:[#allocation13 + $0x10] sm:$0xff]
    %v562 = vld [vmem:[#allocation13 + $0x18] sm:$0xff]
    %v563 = vld [vmem:[#allocation13 + $0x20] sm:$0xff]
    %v564 = vld [vmem:[#allocation13 + $0x28] sm:$0xff]
    %v565 = vld [vmem:[#allocation13 + $0x30] sm:$0xff]
    %v566 = vld [vmem:[#allocation13 + $0x38] sm:$0xff]
    %v567 = vld [vmem:[#allocation13 + $0x40] sm:$0xff]
    %v568 = vld [vmem:[#allocation13 + $0x48] sm:$0xff]
    %v569 = vld [vmem:[#allocation13 + $0x50] sm:$0xff]
    %v570 = vld [vmem:[#allocation13 + $0x58] sm:$0xff]
    %v571 = vld [vmem:[#allocation13 + $0x60] sm:$0xff]
    %v572 = vld [vmem:[#allocation13 + $0x68] sm:$0xff]
    %v573 = vld [vmem:[#allocation13 + $0x70] sm:$0xff]
    %v574 = vld [vmem:[#allocation13 + $0x78] sm:$0xff]
    %v575 = vld [vmem:[%s11] sm:$0x1]
    %v577 = vlaneseq
    %v578 = vshrl.u32 %v577, 7
    %v579 = vsub.s32 0, %v578
    %v580 = vrot.slane %v575, %v579
    %582 = vmatprep.subr.mxu0 0.0
    %583 = vmatpush1.msra.mxu0 %v559
    %584 = vmatprep.subr.mxu0 0.0
    %585 = vmatpush1.msra.mxu0 %v560
    %586 = vmatprep.subr.mxu0 0.0
    %587 = vmatpush1.msra.mxu0 %v561
    %588 = vmatprep.subr.mxu0 0.0
    %589 = vmatpush1.msra.mxu0 %v562
    %590 = vmatprep.subr.mxu0 0.0
    %591 = vmatpush1.msra.mxu0 %v563
    %592 = vmatprep.subr.mxu0 0.0
    %593 = vmatpush1.msra.mxu0 %v564
    %594 = vmatprep.subr.mxu0 0.0
    %595 = vmatpush1.msra.mxu0 %v565
    %596 = vmatprep.subr.mxu0 0.0
    %597 = vmatpush1.msra.mxu0 %v566
    %598 = vmatprep.subr.mxu0 0.0
    %599 = vmatpush1.msra.mxu0 %v567
    %600 = vmatprep.subr.mxu0 0.0
    %601 = vmatpush1.msra.mxu0 %v568
    %602 = vmatprep.subr.mxu0 0.0
    %603 = vmatpush1.msra.mxu0 %v569
    %604 = vmatprep.subr.mxu0 0.0
    %605 = vmatpush1.msra.mxu0 %v570
    %606 = vmatprep.subr.mxu0 0.0
    %607 = vmatpush1.msra.mxu0 %v571
    %608 = vmatprep.subr.mxu0 0.0
    %609 = vmatpush1.msra.mxu0 %v572
    %610 = vmatprep.subr.mxu0 0.0
    %611 = vmatpush1.msra.mxu0 %v573
    %612 = vmatprep.subr.mxu0 0.0
    %613 = vmatpush1.msra.mxu0 %v574
    %614 = vmatprep.subr.mxu0 0.0
    %615 = vmatpush1.msra.mxu0 0.0
    %616 = vmatprep.subr.mxu0 0.0
    %617 = vmatpush1.msra.mxu0 0.0
    %618 = vmatprep.subr.mxu0 0.0
    %619 = vmatpush1.msra.mxu0 0.0
    %620 = vmatprep.subr.mxu0 0.0
    %621 = vmatpush1.msra.mxu0 0.0
    %622 = vmatprep.subr.mxu0 0.0
    %623 = vmatpush1.msra.mxu0 0.0
    %624 = vmatprep.subr.mxu0 0.0
    %625 = vmatpush1.msra.mxu0 0.0
    %626 = vmatprep.subr.mxu0 0.0
    %627 = vmatpush1.msra.mxu0 0.0
    %628 = vmatprep.subr.mxu0 0.0
    %629 = vmatpush1.msra.mxu0 0.0
    %630 = vmatprep.subr.mxu0 0.0
    %631 = vmatpush1.msra.mxu0 0.0
    %632 = vmatprep.subr.mxu0 0.0
    %633 = vmatpush1.msra.mxu0 0.0
    %634 = vmatprep.subr.mxu0 0.0
    %635 = vmatpush1.msra.mxu0 0.0
    %636 = vmatprep.subr.mxu0 0.0
    %637 = vmatpush1.msra.mxu0 0.0
    %638 = vmatprep.subr.mxu0 0.0
    %639 = vmatpush1.msra.mxu0 0.0
    %640 = vmatprep.subr.mxu0 0.0
    %641 = vmatpush1.msra.mxu0 0.0
    %642 = vmatprep.subr.mxu0 0.0
    %643 = vmatpush1.msra.mxu0 0.0
    %644 = vmatprep.subr.mxu0 0.0
    %645 = vmatpush1.msra.mxu0 0.0
    %646 = vmatprep.mubr.f32.mxu0 0.0
    %647 = vmatmul.mubr.f32.gmra.mrb[0].mxu0 %v558
    %v648 = vpop.f32.mrb[0].mxu0
    %v649 = vadd.f32 %v580, %v648
    %v650 = vpop.f32.mrb[0].mxu0
    %651 = vdwg.mxu0
    %v652 = vmax.f32 %v649, 0.0
    %v653 = vld [vmem:[#allocation14] sm:$0xff]
    %v654 = vld [vmem:[#allocation14 + $0x8] sm:$0xff]
    %v655 = vld [vmem:[#allocation14 + $0x10] sm:$0xff]
    %v656 = vld [vmem:[#allocation14 + $0x18] sm:$0xff]
    %v657 = vld [vmem:[#allocation14 + $0x20] sm:$0xff]
    %v658 = vld [vmem:[#allocation14 + $0x28] sm:$0xff]
    %v659 = vld [vmem:[#allocation14 + $0x30] sm:$0xff]
    %v660 = vld [vmem:[#allocation14 + $0x38] sm:$0xff]
    %v661 = vld [vmem:[#allocation14 + $0x40] sm:$0xff]
    %v662 = vld [vmem:[#allocation14 + $0x48] sm:$0xff]
    %v663 = vld [vmem:[#allocation14 + $0x50] sm:$0xff]
    %v664 = vld [vmem:[#allocation14 + $0x58] sm:$0xff]
    %v665 = vld [vmem:[#allocation14 + $0x60] sm:$0xff]
    %v666 = vld [vmem:[#allocation14 + $0x68] sm:$0xff]
    %v667 = vld [vmem:[#allocation14 + $0x70] sm:$0xff]
    %v668 = vld [vmem:[#allocation14 + $0x78] sm:$0xff]
    %v669 = vld [vmem:[%s13] sm:$0x1]
    %v671 = vlaneseq
    %v672 = vshrl.u32 %v671, 7
    %v673 = vsub.s32 0, %v672
    %v674 = vrot.slane %v669, %v673
    %676 = vmatprep.subr.mxu0 0.0
    %677 = vmatpush1.msra.mxu0 %v653
    %678 = vmatprep.subr.mxu0 0.0
    %679 = vmatpush1.msra.mxu0 %v654
    %680 = vmatprep.subr.mxu0 0.0
    %681 = vmatpush1.msra.mxu0 %v655
    %682 = vmatprep.subr.mxu0 0.0
    %683 = vmatpush1.msra.mxu0 %v656
    %684 = vmatprep.subr.mxu0 0.0
    %685 = vmatpush1.msra.mxu0 %v657
    %686 = vmatprep.subr.mxu0 0.0
    %687 = vmatpush1.msra.mxu0 %v658
    %688 = vmatprep.subr.mxu0 0.0
    %689 = vmatpush1.msra.mxu0 %v659
    %690 = vmatprep.subr.mxu0 0.0
    %691 = vmatpush1.msra.mxu0 %v660
    %692 = vmatprep.subr.mxu0 0.0
    %693 = vmatpush1.msra.mxu0 %v661
    %694 = vmatprep.subr.mxu0 0.0
    %695 = vmatpush1.msra.mxu0 %v662
    %696 = vmatprep.subr.mxu0 0.0
    %697 = vmatpush1.msra.mxu0 %v663
    %698 = vmatprep.subr.mxu0 0.0
    %699 = vmatpush1.msra.mxu0 %v664
    %700 = vmatprep.subr.mxu0 0.0
    %701 = vmatpush1.msra.mxu0 %v665
    %702 = vmatprep.subr.mxu0 0.0
    %703 = vmatpush1.msra.mxu0 %v666
    %704 = vmatprep.subr.mxu0 0.0
    %705 = vmatpush1.msra.mxu0 %v667
    %706 = vmatprep.subr.mxu0 0.0
    %707 = vmatpush1.msra.mxu0 %v668
    %708 = vmatprep.subr.mxu0 0.0
    %709 = vmatpush1.msra.mxu0 0.0
    %710 = vmatprep.subr.mxu0 0.0
    %711 = vmatpush1.msra.mxu0 0.0
    %712 = vmatprep.subr.mxu0 0.0
    %713 = vmatpush1.msra.mxu0 0.0
    %714 = vmatprep.subr.mxu0 0.0
    %715 = vmatpush1.msra.mxu0 0.0
    %716 = vmatprep.subr.mxu0 0.0
    %717 = vmatpush1.msra.mxu0 0.0
    %718 = vmatprep.subr.mxu0 0.0
    %719 = vmatpush1.msra.mxu0 0.0
    %720 = vmatprep.subr.mxu0 0.0
    %721 = vmatpush1.msra.mxu0 0.0
    %722 = vmatprep.subr.mxu0 0.0
    %723 = vmatpush1.msra.mxu0 0.0
    %724 = vmatprep.subr.mxu0 0.0
    %725 = vmatpush1.msra.mxu0 0.0
    %726 = vmatprep.subr.mxu0 0.0
    %727 = vmatpush1.msra.mxu0 0.0
    %728 = vmatprep.subr.mxu0 0.0
    %729 = vmatpush1.msra.mxu0 0.0
    %730 = vmatprep.subr.mxu0 0.0
    %731 = vmatpush1.msra.mxu0 0.0
    %732 = vmatprep.subr.mxu0 0.0
    %733 = vmatpush1.msra.mxu0 0.0
    %734 = vmatprep.subr.mxu0 0.0
    %735 = vmatpush1.msra.mxu0 0.0
    %736 = vmatprep.subr.mxu0 0.0
    %737 = vmatpush1.msra.mxu0 0.0
    %738 = vmatprep.subr.mxu0 0.0
    %739 = vmatpush1.msra.mxu0 0.0
    %740 = vmatprep.mubr.f32.mxu0 0.0
    %741 = vmatmul.mubr.f32.gmra.mrb[0].mxu0 %v652
    %v742 = vpop.f32.mrb[0].mxu0
    %v743 = vadd.f32 %v674, %v742
    %v744 = vpop.f32.mrb[0].mxu0
    %745 = vdwg.mxu0
    %v746 = vmax.f32 %v743, 0.0
    %v747 = vld [vmem:[#allocation16] sm:$0xff]
    %v748 = vld [vmem:[#allocation16 + $0x8] sm:$0xff]
    %v749 = vld [vmem:[#allocation16 + $0x10] sm:$0xff]
    %v750 = vld [vmem:[#allocation16 + $0x18] sm:$0xff]
    %v751 = vld [vmem:[#allocation16 + $0x20] sm:$0xff]
    %v752 = vld [vmem:[#allocation16 + $0x28] sm:$0xff]
    %v753 = vld [vmem:[#allocation16 + $0x30] sm:$0xff]
    %v754 = vld [vmem:[#allocation16 + $0x38] sm:$0xff]
    %v755 = vld [vmem:[#allocation16 + $0x40] sm:$0xff]
    %v756 = vld [vmem:[#allocation16 + $0x48] sm:$0xff]
    %v757 = vld [vmem:[#allocation16 + $0x50] sm:$0xff]
    %v758 = vld [vmem:[#allocation16 + $0x58] sm:$0xff]
    %v759 = vld [vmem:[#allocation16 + $0x60] sm:$0xff]
    %v760 = vld [vmem:[#allocation16 + $0x68] sm:$0xff]
    %v761 = vld [vmem:[#allocation16 + $0x70] sm:$0xff]
    %v762 = vld [vmem:[#allocation16 + $0x78] sm:$0xff]
    %v763 = vld [vmem:[%s15] sm:$0x1]
    %v765 = vlaneseq
    %v766 = vshrl.u32 %v765, 7
    %v767 = vsub.s32 0, %v766
    %v768 = vrot.slane %v763, %v767
    %770 = vmatprep.subr.mxu0 0.0
    %771 = vmatpush1.msra.mxu0 %v747
    %772 = vmatprep.subr.mxu0 0.0
    %773 = vmatpush1.msra.mxu0 %v748
    %774 = vmatprep.subr.mxu0 0.0
    %775 = vmatpush1.msra.mxu0 %v749
    %776 = vmatprep.subr.mxu0 0.0
    %777 = vmatpush1.msra.mxu0 %v750
    %778 = vmatprep.subr.mxu0 0.0
    %779 = vmatpush1.msra.mxu0 %v751
    %780 = vmatprep.subr.mxu0 0.0
    %781 = vmatpush1.msra.mxu0 %v752
    %782 = vmatprep.subr.mxu0 0.0
    %783 = vmatpush1.msra.mxu0 %v753
    %784 = vmatprep.subr.mxu0 0.0
    %785 = vmatpush1.msra.mxu0 %v754
    %786 = vmatprep.subr.mxu0 0.0
    %787 = vmatpush1.msra.mxu0 %v755
    %788 = vmatprep.subr.mxu0 0.0
    %789 = vmatpush1.msra.mxu0 %v756
    %790 = vmatprep.subr.mxu0 0.0
    %791 = vmatpush1.msra.mxu0 %v757
    %792 = vmatprep.subr.mxu0 0.0
    %793 = vmatpush1.msra.mxu0 %v758
    %794 = vmatprep.subr.mxu0 0.0
    %795 = vmatpush1.msra.mxu0 %v759
    %796 = vmatprep.subr.mxu0 0.0
    %797 = vmatpush1.msra.mxu0 %v760
    %798 = vmatprep.subr.mxu0 0.0
    %799 = vmatpush1.msra.mxu0 %v761
    %800 = vmatprep.subr.mxu0 0.0
    %801 = vmatpush1.msra.mxu0 %v762
    %802 = vmatprep.subr.mxu0 0.0
    %803 = vmatpush1.msra.mxu0 0.0
    %804 = vmatprep.subr.mxu0 0.0
    %805 = vmatpush1.msra.mxu0 0.0
    %806 = vmatprep.subr.mxu0 0.0
    %807 = vmatpush1.msra.mxu0 0.0
    %808 = vmatprep.subr.mxu0 0.0
    %809 = vmatpush1.msra.mxu0 0.0
    %810 = vmatprep.subr.mxu0 0.0
    %811 = vmatpush1.msra.mxu0 0.0
    %812 = vmatprep.subr.mxu0 0.0
    %813 = vmatpush1.msra.mxu0 0.0
    %814 = vmatprep.subr.mxu0 0.0
    %815 = vmatpush1.msra.mxu0 0.0
    %816 = vmatprep.subr.mxu0 0.0
    %817 = vmatpush1.msra.mxu0 0.0
    %818 = vmatprep.subr.mxu0 0.0
    %819 = vmatpush1.msra.mxu0 0.0
    %820 = vmatprep.subr.mxu0 0.0
    %821 = vmatpush1.msra.mxu0 0.0
    %822 = vmatprep.subr.mxu0 0.0
    %823 = vmatpush1.msra.mxu0 0.0
    %824 = vmatprep.subr.mxu0 0.0
    %825 = vmatpush1.msra.mxu0 0.0
    %826 = vmatprep.subr.mxu0 0.0
    %827 = vmatpush1.msra.mxu0 0.0
    %828 = vmatprep.subr.mxu0 0.0
    %829 = vmatpush1.msra.mxu0 0.0
    %830 = vmatprep.subr.mxu0 0.0
    %831 = vmatpush1.msra.mxu0 0.0
    %832 = vmatprep.subr.mxu0 0.0
    %833 = vmatpush1.msra.mxu0 0.0
    %834 = vmatprep.mubr.f32.mxu0 0.0
    %835 = vmatmul.mubr.f32.gmra.mrb[0].mxu0 %v746
    %v836 = vpop.f32.mrb[0].mxu0
    %v837 = vadd.f32 %v768, %v836
    %v838 = vpop.f32.mrb[0].mxu0
    %839 = vdwg.mxu0
    %840 = vst [vmem:[#allocation17] sm:$0xff] %v457
    %841 = vst [vmem:[#allocation18] sm:$0xff] %v550
    %842 = vst [vmem:[#allocation20] sm:$0xff] %v558
    %843 = vst [vmem:[#allocation21] sm:$0xff] %v837
    // Predicated region
    $region102: #{tpu_custom_call.1} parent=1 // pred_check
      _
    $region103: #{tpu_custom_call.1} parent=1 // pred_check_branch
      %845 = sbr.rel (0) target = $region105
    $region104: #{tpu_custom_call.1} parent=1 // pred_region
      %s847 = ssub.s32 128, 128
      %848 = vsyncadd [#allocation4], %s847
      %s850 = sshll.u32 [#allocation17], 4
      %s851 = int_to_ptr.vmem [resolvable:$true] %s850
      %853 = dma.vmem_to_hbm [thread:$0]  %s851, 128, %s16, [#allocation4]
    $region105: #{tpu_custom_call.1} parent=1 // pred_fallthru
      _
    // Predicated region
    $region106: #{tpu_custom_call.1} parent=1 // pred_check
      _
    $region107: #{tpu_custom_call.1} parent=1 // pred_check_branch
      %855 = sbr.rel (0) target = $region109
    $region108: #{tpu_custom_call.1} parent=1 // pred_region
      %s857 = ssub.s32 128, 128
      %858 = vsyncadd [#allocation19], %s857
      %s860 = sshll.u32 [#allocation18], 4
      %s861 = int_to_ptr.vmem [resolvable:$true] %s860
      %863 = dma.vmem_to_hbm [thread:$0]  %s861, 128, %s17, [#allocation19]
    $region109: #{tpu_custom_call.1} parent=1 // pred_fallthru
      _
    // Predicated region
    $region110: #{tpu_custom_call.1} parent=1 // pred_check
      _
    $region111: #{tpu_custom_call.1} parent=1 // pred_check_branch
      %865 = sbr.rel (0) target = $region113
    $region112: #{tpu_custom_call.1} parent=1 // pred_region
      %s867 = ssub.s32 128, 128
      %868 = vsyncadd [#allocation19], %s867
      %s870 = sshll.u32 [#allocation20], 4
      %s871 = int_to_ptr.vmem [resolvable:$true] %s870
      %873 = dma.vmem_to_hbm [thread:$0]  %s871, 128, %s18, [#allocation19]
    $region113: #{tpu_custom_call.1} parent=1 // pred_fallthru
      _
    // Predicated region
    $region114: #{tpu_custom_call.1} parent=1 // pred_check
      _
    $region115: #{tpu_custom_call.1} parent=1 // pred_check_branch
      %875 = sbr.rel (0) target = $region117
    $region116: #{tpu_custom_call.1} parent=1 // pred_region
      %s877 = ssub.s32 128, 128
      %878 = vsyncadd [#allocation22], %s877
      %s880 = sshll.u32 [#allocation21], 4
      %s881 = int_to_ptr.vmem [resolvable:$true] %s880
      %883 = dma.vmem_to_hbm [thread:$0]  %s881, 128, %s19, [#allocation22]
    $region117: #{tpu_custom_call.1} parent=1 // pred_fallthru
      _
    // Predicated region
    $region118: #{tpu_custom_call.1} parent=1 // pred_check
      _
    $region119: #{tpu_custom_call.1} parent=1 // pred_check_branch
      %885 = sbr.rel (0) target = $region121
    $region120: #{tpu_custom_call.1} parent=1 // pred_region
      %886 = dma.done [#allocation4], 128
    $region121: #{tpu_custom_call.1} parent=1 // pred_fallthru
      _
    // Predicated region
    $region122: #{tpu_custom_call.1} parent=1 // pred_check
      _
    $region123: #{tpu_custom_call.1} parent=1 // pred_check_branch
      %888 = sbr.rel (0) target = $region125
    $region124: #{tpu_custom_call.1} parent=1 // pred_region
      %889 = dma.done [#allocation19], 128
    $region125: #{tpu_custom_call.1} parent=1 // pred_fallthru
      _
    // Predicated region
    $region126: #{tpu_custom_call.1} parent=1 // pred_check
      _
    $region127: #{tpu_custom_call.1} parent=1 // pred_check_branch
      %891 = sbr.rel (0) target = $region129
    $region128: #{tpu_custom_call.1} parent=1 // pred_region
      %892 = dma.done [#allocation19], 128
    $region129: #{tpu_custom_call.1} parent=1 // pred_fallthru
      _
    // Predicated region
    $region130: #{tpu_custom_call.1} parent=1 // pred_check
      _
    $region131: #{tpu_custom_call.1} parent=1 // pred_check_branch
      %894 = sbr.rel (0) target = $region133
    $region132: #{tpu_custom_call.1} parent=1 // pred_region
      %895 = dma.done [#allocation22], 128
    $region133: #{tpu_custom_call.1} parent=1 // pred_fallthru
      _
    %896 = vsyncpa [#allocation3], 1
    %897 = vsyncpa [#allocation6], 1
    %898 = vsyncpa [#allocation9], 1
    %899 = vsyncpa [#allocation12], 1
    %900 = vsyncpa [#allocation15], 1
    %901 = vsyncpa [#allocation4], 1
    %902 = vsyncpa [#allocation19], 1
    %903 = vsyncpa [#allocation22], 1

</llo_original>
